<compile_context>
chip_gen: v5e
topology: v5e:2x2
jax: 0.10.0
libtpu: 0.0.40
codegen_flags: <defaults>
</compile_context>

<pallas_src>
import functools

import jax
import jax.numpy as jnp
from jax.experimental import pallas as pl
from jax.experimental.pallas import tpu as pltpu


def _conv3x3_relu_kernel(x_ref, w_ref, o_ref, *, BN, H, W, Cin, Cout):
    # x_ref: (BN, Cin, H*W)   flattened NCHW images (BN batch elements)
    # w_ref: (Cout, 9*Cin)    weight, (kh*3+kw)-major / ci-minor columns
    # o_ref: (BN, Cout, H*W)  lane-dense output block
    HW = H * W

    # Hoisted once per grid step (shared by every image and every tap).
    col = jax.lax.broadcasted_iota(jnp.int32, (Cin, HW), 1) % W
    mask_l = col >= 1            # valid output positions for a dw = -1 tap
    mask_r = col <= (W - 2)      # valid output positions for a dw = +1 tap
    zpad = jnp.zeros((Cin, 2 * W), dtype=x_ref.dtype)

    patches = []
    for n in range(BN):                                   # static, unrolled
        x = x_ref[n]                                      # (Cin, HW)
        # Zero-extend by 2*W lanes on each side: supplies the padding row above
        # (row -1) / below (row H) and keeps every tap slice in bounds.
        xp = jnp.concatenate([zpad, x, zpad], axis=1)     # (Cin, HW + 4*W)

        taps = []
        for dh in (-1, 0, 1):
            for dw in (-1, 0, 1):
                off = (2 + dh) * W + dw                   # static lane offset
                t = xp[:, off:off + HW]                   # (Cin, HW) lane slice
                if dw == -1:
                    t = jnp.where(mask_l, t, 0.0)
                elif dw == 1:
                    t = jnp.where(mask_r, t, 0.0)
                taps.append(t)
        patches.append(jnp.concatenate(taps, axis=0))     # (9*Cin, HW)

    # Batch concatenated along lanes at HW-aligned (multiple-of-128) offsets.
    patch = jnp.concatenate(patches, axis=1) if BN > 1 else patches[0]  # (9*Cin, BN*HW)

    # Single fused matmul: (Cout, 9*Cin) @ (9*Cin, BN*HW) -> (Cout, BN*HW), f32 acc.
    out = jnp.dot(w_ref[...], patch, preferred_element_type=jnp.float32)
    out = jnp.maximum(out, 0.0).astype(o_ref.dtype)       # ReLU

    for n in range(BN):                                   # 128-aligned lane slices
        o_ref[n] = out[:, n * HW:(n + 1) * HW]


def _pick_batch_tile(N, Cin, Cout, HW, vmem_budget_bytes=4 << 20):
    """Largest divisor of N (<= 8) whose per-step working set stays small."""
    per_img = 4 * HW * (Cin + 9 * Cin + Cout) + 4 * 4 * (HW // max(HW, 1))  # rough f32 bytes
    cap = max(1, min(8, vmem_budget_bytes // max(per_img, 1)))
    bn = 1
    for d in range(1, N + 1):
        if N % d == 0 and d <= cap:
            bn = d
    return bn


def basic_block_vgg_nobn(x_nchw, weight_oihw, *, batch_tile=None):
    """Forward of BasicBlock_vgg_nobn (PyTorch NCHW / OIHW layouts in and out)."""
    N, Cin, H, W = x_nchw.shape
    Cout = weight_oihw.shape[0]
    HW = H * W

    if batch_tile is None:
        batch_tile = _pick_batch_tile(N, Cin, Cout, HW)
    BN = batch_tile
    assert N % BN == 0

    # Free reshapes only -- no transpose / pad of the activation in HBM.
    x_flat = x_nchw.reshape(N, Cin, HW)                                    # (N, Cin, HW)
    # (Cout, Cin, 3, 3) -> (Cout, 3, 3, Cin) -> (Cout, 9*Cin); tiny weight matrix.
    w_mat = jnp.transpose(weight_oihw, (0, 2, 3, 1)).reshape(Cout, 9 * Cin)

    kernel = functools.partial(
        _conv3x3_relu_kernel, BN=BN, H=H, W=W, Cin=Cin, Cout=Cout)

    out_flat = pl.pallas_call(
        kernel,
        out_shape=jax.ShapeDtypeStruct((N, Cout, HW), x_nchw.dtype),
        grid_spec=pltpu.PrefetchScalarGridSpec(
            num_scalar_prefetch=0,
            grid=(N // BN,),
            in_specs=[
                pl.BlockSpec((BN, Cin, HW), lambda b: (b, 0, 0)),
                pl.BlockSpec((Cout, 9 * Cin), lambda b: (0, 0)),   # resident weight
            ],
            out_specs=pl.BlockSpec((BN, Cout, HW), lambda b: (b, 0, 0)),
        ),
        compiler_params=pltpu.CompilerParams(
            dimension_semantics=("parallel",)),
    )(x_flat, w_mat)

    return out_flat.reshape(N, Cout, H, W)          # already NCHW; pure reshape


if __name__ == "__main__":
    key = jax.random.PRNGKey(0)
    k_x, k_w = jax.random.split(key)

    # Small shapes consistent with the module: batch=2, in_planes=4, planes=8, 16x16.
    N, Cin, Cout, H, W = 2, 4, 8, 16, 16

    x = jax.random.normal(k_x, (N, Cin, H, W), dtype=jnp.float32)
    fan_in = Cin * 3 * 3
    bound = (1.0 / fan_in) ** 0.5 * (3.0 ** 0.5)
    weight = jax.random.uniform(k_w, (Cout, Cin, 3, 3), dtype=jnp.float32,
                                minval=-bound, maxval=bound)

    out = basic_block_vgg_nobn(x, weight)
    out = jax.block_until_ready(out)

    # Cross-check against XLA's conv.
    ref = jax.lax.conv_general_dilated(
        x, weight, window_strides=(1, 1), padding=((1, 1), (1, 1)),
        dimension_numbers=("NCHW", "OIHW", "NCHW"))
    ref = jnp.maximum(ref, 0.0)
    assert out.shape == (N, Cout, H, W)
    assert jnp.allclose(out, ref, atol=1e-4, rtol=1e-4)

    print("KERNEL_OK")
</pallas_src>

<mosaic_0001>
module attributes {stable_mosaic.version = 11 : i64} {
  func.func @_conv3x3_relu_kernel(%arg0: i32, %arg1: memref<2x4x256xf32, #tpu.memory_space<vmem>>, %arg2: memref<8x36xf32, #tpu.memory_space<vmem>>, %arg3: memref<2x8x256xf32, #tpu.memory_space<vmem>>) attributes {dimension_semantics = [#tpu.dimension_semantics<parallel>], iteration_bounds = array<i64: 1>, scalar_prefetch = 0 : i64, scratch_operands = 0 : i64, tpu.core_type = #tpu.core_type<tc>, window_params = [{transform_indices = @transform_0, window_bounds = array<i64: 2, 4, 256>}, {pipeline_mode = #tpu.pipeline_mode<synchronous>, transform_indices = @transform_1, window_bounds = array<i64: 8, 36>}, {transform_indices = @transform_2, window_bounds = array<i64: 2, 8, 256>}]} {
    %0 = tpu.iota {dimensions = array<i32: 1>} : vector<4x256xi32>
    %c16_i32 = arith.constant 16 : i32
    %c0_i32 = arith.constant 0 : i32
    %1 = arith.cmpi eq, %c16_i32, %c0_i32 : i32
    %c1_i32 = arith.constant 1 : i32
    %2 = arith.select %1, %c1_i32, %c16_i32 : i32
    %3 = vector.broadcast %2 : i32 to vector<4x256xi32>
    %4 = arith.remsi %0, %3 : vector<4x256xi32>
    %c0_i32_0 = arith.constant 0 : i32
    %5 = vector.broadcast %c0_i32_0 : i32 to vector<4x256xi32>
    %6 = arith.cmpi ne, %4, %5 : vector<4x256xi32>
    %c0_i32_1 = arith.constant 0 : i32
    %7 = vector.broadcast %c0_i32_1 : i32 to vector<4x256xi32>
    %8 = arith.cmpi slt, %4, %7 : vector<4x256xi32>
    %c0_i32_2 = arith.constant 0 : i32
    %9 = arith.cmpi slt, %2, %c0_i32_2 : i32
    %10 = vector.broadcast %9 : i1 to vector<4x256xi1>
    %11 = vector.broadcast %10 : vector<4x256xi1> to vector<4x256xi1>
    %12 = arith.xori %8, %11 : vector<4x256xi1>
    %13 = arith.andi %12, %6 : vector<4x256xi1>
    %14 = vector.broadcast %2 : i32 to vector<4x256xi32>
    %15 = arith.addi %4, %14 : vector<4x256xi32>
    %16 = arith.select %13, %15, %4 : vector<4x256xi1>, vector<4x256xi32>
    %c1_i32_3 = arith.constant 1 : i32
    %17 = vector.broadcast %c1_i32_3 : i32 to vector<4x256xi32>
    %18 = arith.cmpi sge, %16, %17 : vector<4x256xi32>
    %c14_i32 = arith.constant 14 : i32
    %19 = vector.broadcast %c14_i32 : i32 to vector<4x256xi32>
    %20 = arith.cmpi sle, %16, %19 : vector<4x256xi32>
    %cst = arith.constant 0.000000e+00 : f32
    %21 = vector.broadcast %cst : f32 to vector<4x32xf32>
    %c0 = arith.constant 0 : index
    %c0_4 = arith.constant 0 : index
    %c0_5 = arith.constant 0 : index
    %22 = vector.load %arg1[%c0, %c0_4, %c0_5] : memref<2x4x256xf32, #tpu.memory_space<vmem>>, vector<1x4x256xf32>
    %23 = vector.shape_cast %22 : vector<1x4x256xf32> to vector<4x256xf32>
    %24 = tpu.concatenate %21, %23, %21 in 1 : vector<4x32xf32>, vector<4x256xf32>, vector<4x32xf32> -> vector<4x320xf32>
    %25 = vector.extract_strided_slice %24 {offsets = [0, 15], sizes = [4, 256], strides = [1, 1]} : vector<4x320xf32> to vector<4x256xf32>
    %cst_6 = arith.constant 0.000000e+00 : f32
    %26 = vector.broadcast %cst_6 : f32 to vector<4x256xf32>
    %27 = arith.select %18, %25, %26 : vector<4x256xi1>, vector<4x256xf32>
    %28 = vector.extract_strided_slice %24 {offsets = [0, 16], sizes = [4, 256], strides = [1, 1]} : vector<4x320xf32> to vector<4x256xf32>
    %29 = vector.extract_strided_slice %24 {offsets = [0, 17], sizes = [4, 256], strides = [1, 1]} : vector<4x320xf32> to vector<4x256xf32>
    %cst_7 = arith.constant 0.000000e+00 : f32
    %30 = vector.broadcast %cst_7 : f32 to vector<4x256xf32>
    %31 = arith.select %20, %29, %30 : vector<4x256xi1>, vector<4x256xf32>
    %32 = vector.extract_strided_slice %24 {offsets = [0, 31], sizes = [4, 256], strides = [1, 1]} : vector<4x320xf32> to vector<4x256xf32>
    %cst_8 = arith.constant 0.000000e+00 : f32
    %33 = vector.broadcast %cst_8 : f32 to vector<4x256xf32>
    %34 = arith.select %18, %32, %33 : vector<4x256xi1>, vector<4x256xf32>
    %35 = vector.extract_strided_slice %24 {offsets = [0, 32], sizes = [4, 256], strides = [1, 1]} : vector<4x320xf32> to vector<4x256xf32>
    %36 = vector.extract_strided_slice %24 {offsets = [0, 33], sizes = [4, 256], strides = [1, 1]} : vector<4x320xf32> to vector<4x256xf32>
    %cst_9 = arith.constant 0.000000e+00 : f32
    %37 = vector.broadcast %cst_9 : f32 to vector<4x256xf32>
    %38 = arith.select %20, %36, %37 : vector<4x256xi1>, vector<4x256xf32>
    %39 = vector.extract_strided_slice %24 {offsets = [0, 47], sizes = [4, 256], strides = [1, 1]} : vector<4x320xf32> to vector<4x256xf32>
    %cst_10 = arith.constant 0.000000e+00 : f32
    %40 = vector.broadcast %cst_10 : f32 to vector<4x256xf32>
    %41 = arith.select %18, %39, %40 : vector<4x256xi1>, vector<4x256xf32>
    %42 = vector.extract_strided_slice %24 {offsets = [0, 48], sizes = [4, 256], strides = [1, 1]} : vector<4x320xf32> to vector<4x256xf32>
    %43 = vector.extract_strided_slice %24 {offsets = [0, 49], sizes = [4, 256], strides = [1, 1]} : vector<4x320xf32> to vector<4x256xf32>
    %cst_11 = arith.constant 0.000000e+00 : f32
    %44 = vector.broadcast %cst_11 : f32 to vector<4x256xf32>
    %45 = arith.select %20, %43, %44 : vector<4x256xi1>, vector<4x256xf32>
    %46 = tpu.concatenate %27, %28, %31, %34, %35, %38, %41, %42, %45 in 0 : vector<4x256xf32>, vector<4x256xf32>, vector<4x256xf32>, vector<4x256xf32>, vector<4x256xf32>, vector<4x256xf32>, vector<4x256xf32>, vector<4x256xf32>, vector<4x256xf32> -> vector<36x256xf32>
    %c1 = arith.constant 1 : index
    %c0_12 = arith.constant 0 : index
    %c0_13 = arith.constant 0 : index
    %47 = vector.load %arg1[%c1, %c0_12, %c0_13] : memref<2x4x256xf32, #tpu.memory_space<vmem>>, vector<1x4x256xf32>
    %48 = vector.shape_cast %47 : vector<1x4x256xf32> to vector<4x256xf32>
    %49 = tpu.concatenate %21, %48, %21 in 1 : vector<4x32xf32>, vector<4x256xf32>, vector<4x32xf32> -> vector<4x320xf32>
    %50 = vector.extract_strided_slice %49 {offsets = [0, 15], sizes = [4, 256], strides = [1, 1]} : vector<4x320xf32> to vector<4x256xf32>
    %cst_14 = arith.constant 0.000000e+00 : f32
    %51 = vector.broadcast %cst_14 : f32 to vector<4x256xf32>
    %52 = arith.select %18, %50, %51 : vector<4x256xi1>, vector<4x256xf32>
    %53 = vector.extract_strided_slice %49 {offsets = [0, 16], sizes = [4, 256], strides = [1, 1]} : vector<4x320xf32> to vector<4x256xf32>
    %54 = vector.extract_strided_slice %49 {offsets = [0, 17], sizes = [4, 256], strides = [1, 1]} : vector<4x320xf32> to vector<4x256xf32>
    %cst_15 = arith.constant 0.000000e+00 : f32
    %55 = vector.broadcast %cst_15 : f32 to vector<4x256xf32>
    %56 = arith.select %20, %54, %55 : vector<4x256xi1>, vector<4x256xf32>
    %57 = vector.extract_strided_slice %49 {offsets = [0, 31], sizes = [4, 256], strides = [1, 1]} : vector<4x320xf32> to vector<4x256xf32>
    %cst_16 = arith.constant 0.000000e+00 : f32
    %58 = vector.broadcast %cst_16 : f32 to vector<4x256xf32>
    %59 = arith.select %18, %57, %58 : vector<4x256xi1>, vector<4x256xf32>
    %60 = vector.extract_strided_slice %49 {offsets = [0, 32], sizes = [4, 256], strides = [1, 1]} : vector<4x320xf32> to vector<4x256xf32>
    %61 = vector.extract_strided_slice %49 {offsets = [0, 33], sizes = [4, 256], strides = [1, 1]} : vector<4x320xf32> to vector<4x256xf32>
    %cst_17 = arith.constant 0.000000e+00 : f32
    %62 = vector.broadcast %cst_17 : f32 to vector<4x256xf32>
    %63 = arith.select %20, %61, %62 : vector<4x256xi1>, vector<4x256xf32>
    %64 = vector.extract_strided_slice %49 {offsets = [0, 47], sizes = [4, 256], strides = [1, 1]} : vector<4x320xf32> to vector<4x256xf32>
    %cst_18 = arith.constant 0.000000e+00 : f32
    %65 = vector.broadcast %cst_18 : f32 to vector<4x256xf32>
    %66 = arith.select %18, %64, %65 : vector<4x256xi1>, vector<4x256xf32>
    %67 = vector.extract_strided_slice %49 {offsets = [0, 48], sizes = [4, 256], strides = [1, 1]} : vector<4x320xf32> to vector<4x256xf32>
    %68 = vector.extract_strided_slice %49 {offsets = [0, 49], sizes = [4, 256], strides = [1, 1]} : vector<4x320xf32> to vector<4x256xf32>
    %cst_19 = arith.constant 0.000000e+00 : f32
    %69 = vector.broadcast %cst_19 : f32 to vector<4x256xf32>
    %70 = arith.select %20, %68, %69 : vector<4x256xi1>, vector<4x256xf32>
    %71 = tpu.concatenate %52, %53, %56, %59, %60, %63, %66, %67, %70 in 0 : vector<4x256xf32>, vector<4x256xf32>, vector<4x256xf32>, vector<4x256xf32>, vector<4x256xf32>, vector<4x256xf32>, vector<4x256xf32>, vector<4x256xf32>, vector<4x256xf32> -> vector<36x256xf32>
    %72 = tpu.concatenate %46, %71 in 1 : vector<36x256xf32>, vector<36x256xf32> -> vector<36x512xf32>
    %c0_20 = arith.constant 0 : index
    %c0_21 = arith.constant 0 : index
    %73 = vector.load %arg2[%c0_20, %c0_21] : memref<8x36xf32, #tpu.memory_space<vmem>>, vector<8x36xf32>
    %cst_22 = arith.constant dense<0.000000e+00> : vector<8x512xf32>
    %74 = tpu.matmul %73, %72, %cst_22 {dimension_numbers = #tpu.dot_dimension_numbers<[1], [0], [0], [1], [0, 0, 1, 1], [], []>} : vector<8x36xf32>, vector<36x512xf32>, vector<8x512xf32> -> vector<8x512xf32>
    %cst_23 = arith.constant 0.000000e+00 : f32
    %75 = vector.broadcast %cst_23 : f32 to vector<8x512xf32>
    %76 = arith.maximumf %74, %75 : vector<8x512xf32>
    %77 = vector.extract_strided_slice %76 {offsets = [0, 0], sizes = [8, 256], strides = [1, 1]} : vector<8x512xf32> to vector<8x256xf32>
    %c0_24 = arith.constant 0 : index
    %c0_25 = arith.constant 0 : index
    %c0_26 = arith.constant 0 : index
    %78 = vector.load %arg3[%c0_24, %c0_25, %c0_26] : memref<2x8x256xf32, #tpu.memory_space<vmem>>, vector<1x8x256xf32>
    %79 = vector.shape_cast %78 : vector<1x8x256xf32> to vector<8x256xf32>
    %80 = vector.shape_cast %77 : vector<8x256xf32> to vector<1x8x256xf32>
    tpu.vector_store %arg3[%c0_24, %c0_25, %c0_26], %80 {strides = array<i32>} : memref<2x8x256xf32, #tpu.memory_space<vmem>>, vector<1x8x256xf32>,
    %81 = vector.extract_strided_slice %76 {offsets = [0, 256], sizes = [8, 256], strides = [1, 1]} : vector<8x512xf32> to vector<8x256xf32>
    %c1_27 = arith.constant 1 : index
    %c0_28 = arith.constant 0 : index
    %c0_29 = arith.constant 0 : index
    %82 = vector.load %arg3[%c1_27, %c0_28, %c0_29] : memref<2x8x256xf32, #tpu.memory_space<vmem>>, vector<1x8x256xf32>
    %83 = vector.shape_cast %82 : vector<1x8x256xf32> to vector<8x256xf32>
    %84 = vector.shape_cast %81 : vector<8x256xf32> to vector<1x8x256xf32>
    tpu.vector_store %arg3[%c1_27, %c0_28, %c0_29], %84 {strides = array<i32>} : memref<2x8x256xf32, #tpu.memory_space<vmem>>, vector<1x8x256xf32>,
    return
  }
  func.func @transform_0(%arg0: i32) -> (i32, i32, i32) {
    %c0_i32 = arith.constant 0 : i32
    %c0_i32_0 = arith.constant 0 : i32
    %c0_i32_1 = arith.constant 0 : i32
    return %arg0, %c0_i32, %c0_i32_0 : i32, i32, i32
  }
  func.func @transform_1(%arg0: i32) -> (i32, i32) {
    %c0_i32 = arith.constant 0 : i32
    %c0_i32_0 = arith.constant 0 : i32
    %c0_i32_1 = arith.constant 0 : i32
    return %c0_i32, %c0_i32_0 : i32, i32
  }
  func.func @transform_2(%arg0: i32) -> (i32, i32, i32) {
    %c0_i32 = arith.constant 0 : i32
    %c0_i32_0 = arith.constant 0 : i32
    %c0_i32_1 = arith.constant 0 : i32
    return %arg0, %c0_i32, %c0_i32_0 : i32, i32, i32
  }
}

</mosaic_0001>

<llo_original>
// kernel: tpu_custom_call.1
$region0: #{tpu_custom_call.1}
  #allocation0 [shape = 'u32[]', space=smem, size = 0x4, offset = 0x4, fixed_abs, tag = 'smem constant byte address 0x4 - core index']
  #allocation1 [shape = 'u32[72,128]{1,0:T(1,128)}', space=vmem, size = 0x9000, scoped, tag = 'internal scratch']
  %s0 = inlined_call_operand.hbm [shape: f32[2,4,256], index: 0, kind: input, shape index: {}]
  %s1 = inlined_call_operand.hbm [shape: f32[8,36], index: 1, kind: input, shape index: {}]
  %s2 = inlined_call_operand.hbm [shape: f32[2,8,256], index: 2, kind: output, shape index: {}]
  %s3 = sld [smem:[#allocation0]]
  $region26: #{tpu_custom_call.1} parent=0
    _
  %s5 = ssub.s32 1, %s3
  %s6 = scalar_select 0, %s5, %s3
  $region1: #{tpu_custom_call.1} parent=0
    #allocation2 [shape = 'u8[8192]{0}', space=vmem, size = 0x2000, scoped, tag = 'input window, operand 0, single buffered']
    #allocation3 [shape = 's32[1]{0}', space=sflag, size = 0x4, scoped, tag = 'scoped memory for tpu_custom_call.1']
    #allocation4 [shape = 's32[1]{0}', space=sflag, size = 0x4, scoped, tag = 'scoped memory for tpu_custom_call.1']
    #allocation5 [shape = 'u8[4096]{0}', space=vmem, size = 0x1000, scoped, tag = 'input window, operand 1, single buffered']
    #allocation6 [shape = 's32[1]{0}', space=sflag, size = 0x4, scoped, tag = 'scoped memory for tpu_custom_call.1']
    #allocation7 [shape = 'u8[16384]{0}', space=vmem, size = 0x4000, scoped, tag = 'output window, operand 0, single buffered']
    %7 = vsyncpa [#allocation3], 0
    %8 = vsyncpa [#allocation6], 0
    %9 = vsyncpa [#allocation4], 0
    // Predicated region
    $region2: #{tpu_custom_call.1} parent=1 // pred_check
      _
    $region3: #{tpu_custom_call.1} parent=1 // pred_check_branch
      %11 = sbr.rel (0) target = $region5
    $region4: #{tpu_custom_call.1} parent=1 // pred_region
      %13 = vsyncadd [#allocation3], 0
      %s14 = sshll.u32 %s0, 4
      %s15 = int_to_ptr.hbm [resolvable:$true] %s14
      %s16 = sshll.u32 [#allocation2], 4
      %s17 = int_to_ptr.vmem [resolvable:$true] %s16
      %22 = dma.hbm_to_vmem [thread:$0]  %s15, 256, %s17, [#allocation3], 128, 128, 8
    $region5: #{tpu_custom_call.1} parent=1 // pred_fallthru
      _
    // Predicated region
    $region6: #{tpu_custom_call.1} parent=1 // pred_check
      _
    $region7: #{tpu_custom_call.1} parent=1 // pred_check_branch
      %24 = sbr.rel (0) target = $region9
    $region8: #{tpu_custom_call.1} parent=1 // pred_region
      %26 = vsyncadd [#allocation6], 0
      %s28 = sshll.u32 %s1, 4
      %s29 = int_to_ptr.hbm [resolvable:$true] %s28
      %s30 = sshll.u32 [#allocation5], 4
      %s31 = int_to_ptr.vmem [resolvable:$true] %s30
      %33 = dma.hbm_to_vmem [thread:$0]  %s29, 128, %s31, [#allocation6]
    $region9: #{tpu_custom_call.1} parent=1 // pred_fallthru
      _
    // Predicated region
    $region10: #{tpu_custom_call.1} parent=1 // pred_check
      _
    $region11: #{tpu_custom_call.1} parent=1 // pred_check_branch
      %35 = sbr.rel (0) target = $region13
    $region12: #{tpu_custom_call.1} parent=1 // pred_region
      %37 = dma.done [#allocation3], 256
    $region13: #{tpu_custom_call.1} parent=1 // pred_fallthru
      _
    // Predicated region
    $region14: #{tpu_custom_call.1} parent=1 // pred_check
      _
    $region15: #{tpu_custom_call.1} parent=1 // pred_check_branch
      %39 = sbr.rel (0) target = $region17
    $region16: #{tpu_custom_call.1} parent=1 // pred_region
      %41 = dma.done [#allocation6], 128
    $region17: #{tpu_custom_call.1} parent=1 // pred_fallthru
      _
    %v42 = vlaneseq
    %v43 = vand.u32 %v42, 127
    %v44 = vadd.s32 %v43, 128
    %vm45 = vcmp.lt.s32.totalorder %v43, 0
    %v46 = vsub.s32 0, %v43
    %v47 = vsel %vm45, %v46, %v43
    %v48 = vshrl.u32 %v47, 4
    %v49 = vand.u32 %v47, 15
    %v50 = vsub.s32 0, %v49
    %v51 = vsel %vm45, %v50, %v49
    %vm52 = vcmp.lt.s32.totalorder %v44, 0
    %v53 = vsub.s32 0, %v44
    %v54 = vsel %vm52, %v53, %v44
    %v55 = vshrl.u32 %v54, 4
    %v56 = vand.u32 %v54, 15
    %v57 = vsub.s32 0, %v56
    %v58 = vsel %vm52, %v57, %v56
    %vm59 = vcmp.ne.s32.totalorder %v51, 0
    %vm60 = vcmp.ne.s32.totalorder %v58, 0
    %vm61 = vcmp.lt.s32.totalorder %v51, 0
    %vm62 = vcmp.lt.s32.totalorder %v58, 0
    %vm63 = vmand %vm61, %vm59
    %vm64 = vmand %vm62, %vm60
    %v65 = vadd.s32 %v51, 16
    %v66 = vadd.s32 %v58, 16
    %v67 = vsel %vm63, %v65, %v51
    %v68 = vsel %vm64, %v66, %v58
    %vm69 = vcmp.ge.s32.totalorder %v67, 1
    %vm70 = vcmp.ge.s32.totalorder %v68, 1
    %vm71 = vcmp.le.s32.totalorder %v67, 14
    %vm72 = vcmp.le.s32.totalorder %v68, 14
    %v73 = vld [vmem:[#allocation2] sm:$0xff]
    %75 = vst [vmem:[#allocation1] ss:$2 sm:$0xff] %v73
    %v76 = vld.sshfl [vmem:[#allocation1] sm:$0xff pattern:$0x75316420]
    %v77 = vld.sshfl [vmem:[#allocation1 + $0x8] sm:$0xff pattern:$0x75316420]
    %78 = vrot.lane.b32.xlu0 %v76, 32
    %v79 = vpop.permute.xlu0 %78
    %80 = vrot.lane.b32.xlu0 %v77, 32
    %v81 = vpop.permute.xlu0 %80
    %vm82 = vcmask 261120
    %v83 = vsel %vm82, %v79, %v81
    %v86 = vsel %vm82, 0.0, %v79
    %v87 = vsel %vm82, %v81, 0.0
    %90 = vrot.lane.b32.xlu0 %v86, 113
    %v91 = vpop.permute.xlu0 %90
    %92 = vrot.lane.b32.xlu0 %v83, 113
    %v93 = vpop.permute.xlu0 %92
    %94 = vrot.lane.b32.xlu0 %v87, 113
    %v95 = vpop.permute.xlu0 %94
    %vm96 = vcmask 924672
    %v97 = vsel %vm96, %v91, %v93
    %v98 = vsel %vm96, %v93, %v95
    %v101 = vsel %vm69, %v97, 0.0
    %v102 = vsel %vm70, %v98, 0.0
    %103 = vrot.lane.b32.xlu0 %v86, 111
    %v104 = vpop.permute.xlu0 %103
    %105 = vrot.lane.b32.xlu0 %v83, 111
    %v106 = vpop.permute.xlu0 %105
    %107 = vrot.lane.b32.xlu0 %v87, 111
    %v108 = vpop.permute.xlu0 %107
    %vm109 = vcmask 908288
    %v110 = vsel %vm109, %v104, %v106
    %v111 = vsel %vm109, %v106, %v108
    %v114 = vsel %vm71, %v110, 0.0
    %v115 = vsel %vm72, %v111, 0.0
    %116 = vrot.lane.b32.xlu0 %v86, 97
    %v117 = vpop.permute.xlu0 %116
    %118 = vrot.lane.b32.xlu0 %v83, 97
    %v119 = vpop.permute.xlu0 %118
    %120 = vrot.lane.b32.xlu0 %v87, 97
    %v121 = vpop.permute.xlu0 %120
    %vm122 = vcmask 793600
    %v123 = vsel %vm122, %v117, %v119
    %v124 = vsel %vm122, %v119, %v121
    %v127 = vsel %vm69, %v123, 0.0
    %v128 = vsel %vm70, %v124, 0.0
    %129 = vrot.lane.b32.xlu0 %v86, 95
    %v130 = vpop.permute.xlu0 %129
    %131 = vrot.lane.b32.xlu0 %v83, 95
    %v132 = vpop.permute.xlu0 %131
    %133 = vrot.lane.b32.xlu0 %v87, 95
    %v134 = vpop.permute.xlu0 %133
    %vm135 = vcmask 777216
    %v136 = vsel %vm135, %v130, %v132
    %v137 = vsel %vm135, %v132, %v134
    %v140 = vsel %vm71, %v136, 0.0
    %v141 = vsel %vm72, %v137, 0.0
    %142 = vrot.lane.b32.xlu0 %v86, 81
    %v143 = vpop.permute.xlu0 %142
    %144 = vrot.lane.b32.xlu0 %v83, 81
    %v145 = vpop.permute.xlu0 %144
    %146 = vrot.lane.b32.xlu0 %v87, 81
    %v147 = vpop.permute.xlu0 %146
    %vm148 = vcmask 662528
    %v149 = vsel %vm148, %v143, %v145
    %v150 = vsel %vm148, %v145, %v147
    %v153 = vsel %vm69, %v149, 0.0
    %v154 = vsel %vm70, %v150, 0.0
    %155 = vrot.lane.b32.xlu0 %v86, 79
    %v156 = vpop.permute.xlu0 %155
    %157 = vrot.lane.b32.xlu0 %v83, 79
    %v158 = vpop.permute.xlu0 %157
    %159 = vrot.lane.b32.xlu0 %v87, 79
    %v160 = vpop.permute.xlu0 %159
    %vm161 = vcmask 646144
    %v162 = vsel %vm161, %v156, %v158
    %v163 = vsel %vm161, %v158, %v160
    %v166 = vsel %vm71, %v162, 0.0
    %v167 = vsel %vm72, %v163, 0.0
    %v168 = vrot.slane %v86, 4
    %v169 = vrot.slane %v83, 4
    %v170 = vrot.slane %v87, 4
    %171 = vrot.lane.b32.xlu0 %v168, 112
    %v172 = vpop.permute.xlu0 %171
    %173 = vrot.lane.b32.xlu0 %v169, 112
    %v174 = vpop.permute.xlu0 %173
    %175 = vrot.lane.b32.xlu0 %v170, 112
    %v176 = vpop.permute.xlu0 %175
    %vm177 = vcmask 916480
    %v178 = vsel %vm177, %v172, %v174
    %v179 = vsel %vm177, %v174, %v176
    %v184 = vrot.slane %v127, 4
    %v185 = vrot.slane %v128, 4
    %188 = vrot.lane.b32.xlu0 %v86, 96
    %v189 = vpop.permute.xlu0 %188
    %190 = vrot.lane.b32.xlu0 %v83, 96
    %v191 = vpop.permute.xlu0 %190
    %192 = vrot.lane.b32.xlu0 %v87, 96
    %v193 = vpop.permute.xlu0 %192
    %vm194 = vcmask 785408
    %v195 = vsel %vm194, %v189, %v191
    %v196 = vsel %vm194, %v191, %v193
    %v201 = vrot.slane %v140, 4
    %v202 = vrot.slane %v141, 4
    %205 = vrot.lane.b32.xlu0 %v168, 80
    %v206 = vpop.permute.xlu0 %205
    %207 = vrot.lane.b32.xlu0 %v169, 80
    %v208 = vpop.permute.xlu0 %207
    %209 = vrot.lane.b32.xlu0 %v170, 80
    %v210 = vpop.permute.xlu0 %209
    %vm211 = vcmask 654336
    %v212 = vsel %vm211, %v206, %v208
    %v213 = vsel %vm211, %v208, %v210
    %vm216 = vcmask 1043456
    %v217 = vsel %vm216, %v101, %v178
    %v218 = vsel %vm216, %v102, %v179
    %v219 = vsel %vm216, %v114, %v184
    %v220 = vsel %vm216, %v115, %v185
    %v221 = vsel %vm216, %v195, %v201
    %v222 = vsel %vm216, %v196, %v202
    %v223 = vsel %vm216, %v153, %v212
    %v224 = vsel %vm216, %v154, %v213
    %s225 = scalar_lea.vmem [#allocation2], 8
    %v226 = vld [vmem:[%s225] sm:$0xff]
    %228 = vst [vmem:[#allocation1] ss:$2 sm:$0xff] %v226
    %v229 = vld.sshfl [vmem:[#allocation1] sm:$0xff pattern:$0x75316420]
    %v230 = vld.sshfl [vmem:[#allocation1 + $0x8] sm:$0xff pattern:$0x75316420]
    %231 = vrot.lane.b32.xlu0 %v229, 32
    %v232 = vpop.permute.xlu0 %231
    %233 = vrot.lane.b32.xlu0 %v230, 32
    %v234 = vpop.permute.xlu0 %233
    %v235 = vsel %vm82, %v232, %v234
    %v238 = vsel %vm82, 0.0, %v232
    %v239 = vsel %vm82, %v234, 0.0
    %242 = vrot.lane.b32.xlu0 %v238, 113
    %v243 = vpop.permute.xlu0 %242
    %244 = vrot.lane.b32.xlu0 %v235, 113
    %v245 = vpop.permute.xlu0 %244
    %246 = vrot.lane.b32.xlu0 %v239, 113
    %v247 = vpop.permute.xlu0 %246
    %v248 = vsel %vm96, %v243, %v245
    %v249 = vsel %vm96, %v245, %v247
    %v252 = vsel %vm69, %v248, 0.0
    %v253 = vsel %vm70, %v249, 0.0
    %254 = vrot.lane.b32.xlu0 %v238, 111
    %v255 = vpop.permute.xlu0 %254
    %256 = vrot.lane.b32.xlu0 %v235, 111
    %v257 = vpop.permute.xlu0 %256
    %258 = vrot.lane.b32.xlu0 %v239, 111
    %v259 = vpop.permute.xlu0 %258
    %v260 = vsel %vm109, %v255, %v257
    %v261 = vsel %vm109, %v257, %v259
    %v264 = vsel %vm71, %v260, 0.0
    %v265 = vsel %vm72, %v261, 0.0
    %266 = vrot.lane.b32.xlu0 %v238, 97
    %v267 = vpop.permute.xlu0 %266
    %268 = vrot.lane.b32.xlu0 %v235, 97
    %v269 = vpop.permute.xlu0 %268
    %270 = vrot.lane.b32.xlu0 %v239, 97
    %v271 = vpop.permute.xlu0 %270
    %v272 = vsel %vm122, %v267, %v269
    %v273 = vsel %vm122, %v269, %v271
    %v276 = vsel %vm69, %v272, 0.0
    %v277 = vsel %vm70, %v273, 0.0
    %278 = vrot.lane.b32.xlu0 %v238, 95
    %v279 = vpop.permute.xlu0 %278
    %280 = vrot.lane.b32.xlu0 %v235, 95
    %v281 = vpop.permute.xlu0 %280
    %282 = vrot.lane.b32.xlu0 %v239, 95
    %v283 = vpop.permute.xlu0 %282
    %v284 = vsel %vm135, %v279, %v281
    %v285 = vsel %vm135, %v281, %v283
    %v288 = vsel %vm71, %v284, 0.0
    %v289 = vsel %vm72, %v285, 0.0
    %290 = vrot.lane.b32.xlu0 %v238, 81
    %v291 = vpop.permute.xlu0 %290
    %292 = vrot.lane.b32.xlu0 %v235, 81
    %v293 = vpop.permute.xlu0 %292
    %294 = vrot.lane.b32.xlu0 %v239, 81
    %v295 = vpop.permute.xlu0 %294
    %v296 = vsel %vm148, %v291, %v293
    %v297 = vsel %vm148, %v293, %v295
    %v300 = vsel %vm69, %v296, 0.0
    %v301 = vsel %vm70, %v297, 0.0
    %302 = vrot.lane.b32.xlu0 %v238, 79
    %v303 = vpop.permute.xlu0 %302
    %304 = vrot.lane.b32.xlu0 %v235, 79
    %v305 = vpop.permute.xlu0 %304
    %306 = vrot.lane.b32.xlu0 %v239, 79
    %v307 = vpop.permute.xlu0 %306
    %v308 = vsel %vm161, %v303, %v305
    %v309 = vsel %vm161, %v305, %v307
    %v312 = vsel %vm71, %v308, 0.0
    %v313 = vsel %vm72, %v309, 0.0
    %v314 = vrot.slane %v238, 4
    %v315 = vrot.slane %v235, 4
    %v316 = vrot.slane %v239, 4
    %317 = vrot.lane.b32.xlu0 %v314, 112
    %v318 = vpop.permute.xlu0 %317
    %319 = vrot.lane.b32.xlu0 %v315, 112
    %v320 = vpop.permute.xlu0 %319
    %321 = vrot.lane.b32.xlu0 %v316, 112
    %v322 = vpop.permute.xlu0 %321
    %v323 = vsel %vm177, %v318, %v320
    %v324 = vsel %vm177, %v320, %v322
    %v329 = vrot.slane %v276, 4
    %v330 = vrot.slane %v277, 4
    %333 = vrot.lane.b32.xlu0 %v238, 96
    %v334 = vpop.permute.xlu0 %333
    %335 = vrot.lane.b32.xlu0 %v235, 96
    %v336 = vpop.permute.xlu0 %335
    %337 = vrot.lane.b32.xlu0 %v239, 96
    %v338 = vpop.permute.xlu0 %337
    %v339 = vsel %vm194, %v334, %v336
    %v340 = vsel %vm194, %v336, %v338
    %v345 = vrot.slane %v288, 4
    %v346 = vrot.slane %v289, 4
    %349 = vrot.lane.b32.xlu0 %v314, 80
    %v350 = vpop.permute.xlu0 %349
    %351 = vrot.lane.b32.xlu0 %v315, 80
    %v352 = vpop.permute.xlu0 %351
    %353 = vrot.lane.b32.xlu0 %v316, 80
    %v354 = vpop.permute.xlu0 %353
    %v355 = vsel %vm211, %v350, %v352
    %v356 = vsel %vm211, %v352, %v354
    %v359 = vsel %vm216, %v252, %v323
    %v360 = vsel %vm216, %v253, %v324
    %v361 = vsel %vm216, %v264, %v329
    %v362 = vsel %vm216, %v265, %v330
    %v363 = vsel %vm216, %v339, %v345
    %v364 = vsel %vm216, %v340, %v346
    %v365 = vsel %vm216, %v300, %v355
    %v366 = vsel %vm216, %v301, %v356
    %v367 = vld [vmem:[#allocation5] sm:$0xff]
    %vm368 = vcmask 293888
    %v370 = vsel %vm368, %v367, 0
    %v373 = vsel %vm216, %v166, 0
    %v376 = vsel %vm216, %v167, 0
    %v379 = vsel %vm216, %v312, 0
    %v382 = vsel %vm216, %v313, 0
    %384 = vmatpush.msra.mxu0 0.0
    %385 = vmatpush.msra.mxu0 0.0
    %386 = vmatpush.msra.mxu0 0.0
    %387 = vmatpush.msra.mxu0 0.0
    %388 = vmatpush.msra.mxu0 0.0
    %389 = vmatpush.msra.mxu0 0.0
    %390 = vmatpush.msra.mxu0 0.0
    %391 = vmatpush.msra.mxu0 0.0
    %392 = vmatpush.msra.mxu0 0.0
    %393 = vmatpush.msra.mxu0 0.0
    %394 = vmatpush.msra.mxu0 0.0
    %395 = vmatpush.msra.mxu0 %v373
    %396 = vmatpush.msra.mxu0 %v223
    %397 = vmatpush.msra.mxu0 %v221
    %398 = vmatpush.msra.mxu0 %v219
    %399 = vmatpush.msra.mxu0 %v217
    %400 = vmatmul.f32.gmra.mxu0 %v370
    %v401 = vpop.f32.mrf.mxu0
    %v402 = vadd.f32 0.0, %v401
    %403 = vdwg.mxu0
    %404 = vmatpush.msra.mxu0 0.0
    %405 = vmatpush.msra.mxu0 0.0
    %406 = vmatpush.msra.mxu0 0.0
    %407 = vmatpush.msra.mxu0 0.0
    %408 = vmatpush.msra.mxu0 0.0
    %409 = vmatpush.msra.mxu0 0.0
    %410 = vmatpush.msra.mxu0 0.0
    %411 = vmatpush.msra.mxu0 0.0
    %412 = vmatpush.msra.mxu0 0.0
    %413 = vmatpush.msra.mxu0 0.0
    %414 = vmatpush.msra.mxu0 0.0
    %415 = vmatpush.msra.mxu0 %v376
    %416 = vmatpush.msra.mxu0 %v224
    %417 = vmatpush.msra.mxu0 %v222
    %418 = vmatpush.msra.mxu0 %v220
    %419 = vmatpush.msra.mxu0 %v218
    %420 = vmatmul.f32.gmra.mxu0 %v370
    %v421 = vpop.f32.mrf.mxu0
    %v422 = vadd.f32 0.0, %v421
    %423 = vdwg.mxu0
    %424 = vmatpush.msra.mxu0 0.0
    %425 = vmatpush.msra.mxu0 0.0
    %426 = vmatpush.msra.mxu0 0.0
    %427 = vmatpush.msra.mxu0 0.0
    %428 = vmatpush.msra.mxu0 0.0
    %429 = vmatpush.msra.mxu0 0.0
    %430 = vmatpush.msra.mxu0 0.0
    %431 = vmatpush.msra.mxu0 0.0
    %432 = vmatpush.msra.mxu0 0.0
    %433 = vmatpush.msra.mxu0 0.0
    %434 = vmatpush.msra.mxu0 0.0
    %435 = vmatpush.msra.mxu0 %v379
    %436 = vmatpush.msra.mxu0 %v365
    %437 = vmatpush.msra.mxu0 %v363
    %438 = vmatpush.msra.mxu0 %v361
    %439 = vmatpush.msra.mxu0 %v359
    %440 = vmatmul.f32.gmra.mxu0 %v370
    %v441 = vpop.f32.mrf.mxu0
    %v442 = vadd.f32 0.0, %v441
    %443 = vdwg.mxu0
    %444 = vmatpush.msra.mxu0 0.0
    %445 = vmatpush.msra.mxu0 0.0
    %446 = vmatpush.msra.mxu0 0.0
    %447 = vmatpush.msra.mxu0 0.0
    %448 = vmatpush.msra.mxu0 0.0
    %449 = vmatpush.msra.mxu0 0.0
    %450 = vmatpush.msra.mxu0 0.0
    %451 = vmatpush.msra.mxu0 0.0
    %452 = vmatpush.msra.mxu0 0.0
    %453 = vmatpush.msra.mxu0 0.0
    %454 = vmatpush.msra.mxu0 0.0
    %455 = vmatpush.msra.mxu0 %v382
    %456 = vmatpush.msra.mxu0 %v366
    %457 = vmatpush.msra.mxu0 %v364
    %458 = vmatpush.msra.mxu0 %v362
    %459 = vmatpush.msra.mxu0 %v360
    %460 = vmatmul.f32.gmra.mxu0 %v370
    %v461 = vpop.f32.mrf.mxu0
    %v462 = vadd.f32 0.0, %v461
    %463 = vdwg.mxu0
    %v464 = vmax.f32 %v402, 0.0
    %v465 = vmax.f32 %v422, 0.0
    %v466 = vmax.f32 %v442, 0.0
    %v467 = vmax.f32 %v462, 0.0
    %468 = vst [vmem:[#allocation7] sm:$0xff] %v464
    %469 = vst [vmem:[#allocation7 + $0x8] sm:$0xff] %v465
    %s470 = scalar_lea.vmem [#allocation7], 16
    %471 = vst [vmem:[%s470] sm:$0xff] %v466
    %472 = vst [vmem:[%s470 + $0x8] sm:$0xff] %v467
    // Predicated region
    $region18: #{tpu_custom_call.1} parent=1 // pred_check
      _
    $region19: #{tpu_custom_call.1} parent=1 // pred_check_branch
      %474 = sbr.rel (0) target = $region21
    $region20: #{tpu_custom_call.1} parent=1 // pred_region
      %476 = vsyncadd [#allocation4], 0
      %s477 = sshll.u32 [#allocation7], 4
      %s478 = int_to_ptr.vmem [resolvable:$true] %s477
      %s479 = sshll.u32 %s2, 4
      %s480 = int_to_ptr.hbm [resolvable:$true] %s479
      %485 = dma.vmem_to_hbm [thread:$0]  %s478, 512, %s480, [#allocation4], 256, 256, 16
    $region21: #{tpu_custom_call.1} parent=1 // pred_fallthru
      _
    // Predicated region
    $region22: #{tpu_custom_call.1} parent=1 // pred_check
      _
    $region23: #{tpu_custom_call.1} parent=1 // pred_check_branch
      %487 = sbr.rel (0) target = $region25
    $region24: #{tpu_custom_call.1} parent=1 // pred_region
      %489 = dma.done [#allocation4], 512
    $region25: #{tpu_custom_call.1} parent=1 // pred_fallthru
      _
    %490 = vsyncpa [#allocation3], 1
    %491 = vsyncpa [#allocation6], 1
    %492 = vsyncpa [#allocation4], 1

</llo_original>
